<compile_context>
chip_gen: v6e
topology: v6e:2x2x1
jax: 0.10.0
libtpu: 0.0.40
codegen_flags: <defaults>
</compile_context>

<pallas_src>
import functools

import jax
import jax.numpy as jnp
from jax import lax
from jax.experimental import pallas as pl
from jax.experimental.pallas import tpu as pltpu


_VMEM_LIMIT = 32 * 1024 * 1024  # safe on v5e (raises 16MiB default) / v6e / v7x

_CP_GRID = pltpu.CompilerParams(dimension_semantics=("parallel",),
                                vmem_limit_bytes=_VMEM_LIMIT)


# ----------------------------- spec helpers -----------------------------

def _bcast_spec(shape):
    """Whole-array block that is the same for every grid step (weights)."""
    nd = len(shape)
    return pl.BlockSpec(tuple(shape), lambda *_: (0,) * nd)


def _batch_spec(shape):
    """(1, ...) block indexed by the batch grid axis."""
    nd = len(shape)
    return pl.BlockSpec((1,) + tuple(shape[1:]), lambda i: (i,) + (0,) * (nd - 1))


# ----------------------------- in-kernel helpers -----------------------------

def _shift_rows(x, s):
    """y[l] = x[l + s] if 0 <= l + s < L else 0 (static in-register row shift)."""
    if s == 0:
        return x
    L, n = x.shape
    if abs(s) >= L:
        return jnp.zeros_like(x)
    zeros = jnp.zeros((abs(s), n), x.dtype)
    if s > 0:
        return jnp.concatenate([x[s:], zeros], axis=0)
    return jnp.concatenate([zeros, x[:L + s]], axis=0)


def _layernorm(x, g, b, eps=1e-5):
    m = jnp.mean(x, axis=-1, keepdims=True)
    v = jnp.mean((x - m) ** 2, axis=-1, keepdims=True)
    return (x - m) * lax.rsqrt(v + eps) * g + b


# ----------------------------- Pallas kernels -----------------------------

def _linear_kernel(x_ref, w_ref, b_ref, o_ref):
    # x: (tm, K) f32, w: (K, N) bf16, b: (1, N) f32
    o_ref[...] = (jnp.dot(x_ref[...].astype(jnp.bfloat16), w_ref[...],
                          preferred_element_type=jnp.float32) + b_ref[...])


def _fused_block_kernel(x_ref, c1w_ref, c1b_ref, s1_ref, t1_ref,
                        pw_ref, s2_ref, t2_ref, o_ref,
                        *, shifts, alpha1, alpha2, add, pool):
    """One whole DilatedConvBlockA/B for one batch element.

    x_ref:   (1, L, Cin) f32
    c1w_ref: (Cin, n) bf16      c1b/s1/t1: (1, n) f32
    pw_ref:  (S, n, nout) bf16  packed per-shift dilation weights with the
             prefix-sum / concat structure folded into the output columns.
    s2/t2:   (1, nout) f32
    o_ref:   (1, L, nout) f32   (or (1, 1, nout) pooled when pool=True)
    """
    x = x_ref[0]                                              # (L, Cin) f32
    L = x.shape[0]

    # 1x1 conv + folded BN + PReLU
    z = jnp.dot(x.astype(jnp.bfloat16), c1w_ref[...],
                preferred_element_type=jnp.float32) + c1b_ref[...]
    z = z * s1_ref[...] + t1_ref[...]
    o1 = jnp.where(z >= 0.0, z, alpha1 * z)                   # (L, n) f32

    # All dilation branches as lane-dense per-shift matmuls, f32 accumulation.
    acc = None
    for j, s in enumerate(shifts):
        if abs(s) >= L:
            continue                                          # contributes zero
        xs = _shift_rows(o1, s).astype(jnp.bfloat16)
        d = jnp.dot(xs, pw_ref[j], preferred_element_type=jnp.float32)
        acc = d if acc is None else acc + d                   # (L, nout)

    if add:
        acc = acc + x
    z2 = acc * s2_ref[...] + t2_ref[...]
    out = jnp.where(z2 >= 0.0, z2, alpha2 * z2)
    if pool:
        o_ref[0] = jnp.max(out, axis=0, keepdims=True)        # fused AdaptiveMaxPool1d(1)
    else:
        o_ref[0] = out


def _conv_bn_prelu_kernel(x_ref, w_ref, b_ref, s_ref, t_ref, o_ref,
                          *, alpha, pool):
    # Conv1d(k=3, pad=1, bias) + folded BN + PReLU for one batch element.
    x = x_ref[0]                                              # (L, Cin) f32
    acc = jnp.dot(x.astype(jnp.bfloat16), w_ref[1],
                  preferred_element_type=jnp.float32)          # center tap
    acc = acc + jnp.dot(_shift_rows(x, -1).astype(jnp.bfloat16), w_ref[0],
                        preferred_element_type=jnp.float32)
    acc = acc + jnp.dot(_shift_rows(x, 1).astype(jnp.bfloat16), w_ref[2],
                        preferred_element_type=jnp.float32)
    z = acc + b_ref[...]
    z = z * s_ref[...] + t_ref[...]
    out = jnp.where(z >= 0.0, z, alpha * z)
    if pool:
        o_ref[0] = jnp.max(out, axis=0, keepdims=True)        # fused AdaptiveMaxPool1d(1)
    else:
        o_ref[0] = out


def _dual_encoder_kernel(x1_ref, x2_ref, wq_ref, wk_ref, wv_ref, wo_ref,
                         ln1g_ref, ln1b_ref, w1_ref, b1_ref, w2_ref, b2_ref,
                         ln2g_ref, ln2b_ref, o1_ref, o2_ref,
                         *, n_head, d_head, lq, lk):
    """Both cross-attention directions with one shared weight set.

    x1_ref: (1, lq, D) smi embedding, x2_ref: (1, lk, D) pkt embedding.
    wq/wk/wv/wo: (D, D) bf16 (heads packed along output columns), w1/w2 FFN.
    o1_ref = EncoderLayer(smi, pkt), o2_ref = EncoderLayer(pkt, smi_pre_attn).
    """
    scale = 1.0 / (d_head ** 0.5)
    smi = x1_ref[0]                                           # (lq, D) f32
    pkt = x2_ref[0]                                           # (lk, D) f32
    xall = jnp.concatenate([smi, pkt], axis=0)                # (lq+lk, D)
    xb = xall.astype(jnp.bfloat16)

    # Q/K/V computed ONCE for both directions, lane-dense (D,D) projections.
    q = jnp.dot(xb, wq_ref[...], preferred_element_type=jnp.float32)
    k = jnp.dot(xb, wk_ref[...], preferred_element_type=jnp.float32)
    v = jnp.dot(xb, wv_ref[...], preferred_element_type=jnp.float32)

    def attend(qr, kr, vr):
        heads = []
        for h in range(n_head):
            qh = qr[:, h * d_head:(h + 1) * d_head].astype(jnp.bfloat16)
            kh = kr[:, h * d_head:(h + 1) * d_head].astype(jnp.bfloat16)
            vh = vr[:, h * d_head:(h + 1) * d_head].astype(jnp.bfloat16)
            s = lax.dot_general(qh, kh, (((1,), (1,)), ((), ())),
                                preferred_element_type=jnp.float32) * scale
            s = s - jnp.max(s, axis=-1, keepdims=True)
            p = jnp.exp(s)
            p = p * pl.reciprocal(jnp.sum(p, axis=-1, keepdims=True), approx=True)
            heads.append(jnp.dot(p.astype(jnp.bfloat16), vh,
                                 preferred_element_type=jnp.float32))
        return jnp.concatenate(heads, axis=-1)

    att1 = attend(q[:lq], k[lq:], v[lq:])                     # smi attends pkt
    att2 = attend(q[lq:], k[:lq], v[:lq])                     # pkt attends smi (pre-attn)
    att = jnp.concatenate([att1, att2], axis=0)               # (lq+lk, D)

    # shared (both directions) output proj + LN + FFN + LN, all lane-dense
    proj = jnp.dot(att.astype(jnp.bfloat16), wo_ref[...],
                   preferred_element_type=jnp.float32)
    h1 = _layernorm(proj + xall, ln1g_ref[...], ln1b_ref[...])
    f = jnp.dot(h1.astype(jnp.bfloat16), w1_ref[...],
                preferred_element_type=jnp.float32) + b1_ref[...]
    f = jnp.maximum(f, 0.0)
    f = jnp.dot(f.astype(jnp.bfloat16), w2_ref[...],
                preferred_element_type=jnp.float32) + b2_ref[...]
    out = _layernorm(f + h1, ln2g_ref[...], ln2b_ref[...])

    o1_ref[0] = out[:lq]
    o2_ref[0] = out[lq:]


# ----------------------------- kernel wrappers -----------------------------

def linear(x, p):
    shp = x.shape
    x2 = x.reshape(-1, shp[-1]).astype(jnp.float32)
    rows, kdim = x2.shape
    dout = p['w'].shape[1]
    tm = rows if rows <= 512 else 512                        # row-tiled, parallel grid
    out = pl.pallas_call(
        _linear_kernel,
        out_shape=jax.ShapeDtypeStruct((rows, dout), jnp.float32),
        grid=(pl.cdiv(rows, tm),),
        in_specs=[pl.BlockSpec((tm, kdim), lambda i: (i, 0)),
                  _bcast_spec((kdim, dout)),
                  _bcast_spec((1, dout))],
        out_specs=pl.BlockSpec((tm, dout), lambda i: (i, 0)),
        compiler_params=_CP_GRID,
    )(x2, p['w'], p['b'])
    return out.reshape(shp[:-1] + (dout,))


def fused_block(p, x, pool=False):
    b, l, cin = x.shape
    n = p['c1w'].shape[-1]
    nout = p['s2'].shape[-1]
    S = p['pw'].shape[0]
    kern = functools.partial(_fused_block_kernel, shifts=p['shifts'],
                             alpha1=p['a1'], alpha2=p['a2'], add=p['add'],
                             pool=pool)
    lo = 1 if pool else l
    return pl.pallas_call(
        kern,
        out_shape=jax.ShapeDtypeStruct((b, lo, nout), jnp.float32),
        grid=(b,),
        in_specs=[_batch_spec((b, l, cin)),
                  _bcast_spec((cin, n)),
                  _bcast_spec((1, n)), _bcast_spec((1, n)), _bcast_spec((1, n)),
                  _bcast_spec((S, n, nout)),
                  _bcast_spec((1, nout)), _bcast_spec((1, nout))],
        out_specs=_batch_spec((b, lo, nout)),
        compiler_params=_CP_GRID,
    )(x, p['c1w'], p['c1b'], p['s1'], p['t1'], p['pw'], p['s2'], p['t2'])


def conv_bn_prelu(p, x, pool=False):
    b, l, cin = x.shape
    oc = p['w'].shape[-1]
    kern = functools.partial(_conv_bn_prelu_kernel, alpha=p['a'], pool=pool)
    lo = 1 if pool else l
    return pl.pallas_call(
        kern,
        out_shape=jax.ShapeDtypeStruct((b, lo, oc), jnp.float32),
        grid=(b,),
        in_specs=[_batch_spec((b, l, cin)),
                  _bcast_spec((3, cin, oc)),
                  _bcast_spec((1, oc)), _bcast_spec((1, oc)), _bcast_spec((1, oc))],
        out_specs=_batch_spec((b, lo, oc)),
        compiler_params=_CP_GRID,
    )(x, p['w'], p['b'], p['s'], p['t'])


def dual_encoder(p, smi, pkt):
    b, lq, d = smi.shape
    _, lk, _ = pkt.shape
    d_inner = p['w1'].shape[-1]
    kern = functools.partial(_dual_encoder_kernel, n_head=p['n_head'],
                             d_head=p['d_head'], lq=lq, lk=lk)
    return pl.pallas_call(
        kern,
        out_shape=(jax.ShapeDtypeStruct((b, lq, d), jnp.float32),
                   jax.ShapeDtypeStruct((b, lk, d), jnp.float32)),
        grid=(b,),
        in_specs=[_batch_spec((b, lq, d)),
                  _batch_spec((b, lk, d)),
                  _bcast_spec((d, d)), _bcast_spec((d, d)), _bcast_spec((d, d)),
                  _bcast_spec((d, d)),
                  _bcast_spec((1, d)), _bcast_spec((1, d)),
                  _bcast_spec((d, d_inner)), _bcast_spec((1, d_inner)),
                  _bcast_spec((d_inner, d)), _bcast_spec((1, d)),
                  _bcast_spec((1, d)), _bcast_spec((1, d))],
        out_specs=(_batch_spec((b, lq, d)),
                   _batch_spec((b, lk, d))),
        compiler_params=_CP_GRID,
    )(smi, pkt, p['wq'], p['wk'], p['wv'], p['wo'],
      p['ln1_g'], p['ln1_b'], p['w1'], p['b1'], p['w2'], p['b2'],
      p['ln2_g'], p['ln2_b'])


# ----------------------------- parameter init -----------------------------

class _Keys:
    def __init__(self, key):
        self._key = key

    def __call__(self):
        self._key, sub = jax.random.split(self._key)
        return sub


def _init_linear(kg, din, dout):
    return {'w': (0.05 * jax.random.normal(kg(), (din, dout), jnp.float32)
                  ).astype(jnp.bfloat16),
            'b': 0.05 * jax.random.normal(kg(), (1, dout), jnp.float32)}


def _init_bn_prelu(kg, c, eps=1e-5):
    # inference-mode BatchNorm folded to per-channel scale/shift
    gamma = 1.0 + 0.05 * jax.random.normal(kg(), (c,), jnp.float32)
    beta = 0.05 * jax.random.normal(kg(), (c,), jnp.float32)
    mean = jnp.zeros((c,), jnp.float32)
    var = jnp.ones((c,), jnp.float32)
    scale = gamma / jnp.sqrt(var + eps)
    shift = beta - mean * scale
    return scale.reshape(1, c), shift.reshape(1, c), 0.25  # PReLU default alpha


def _init_block(kg, nin, nout, n_branches):
    """DilatedConvBlockA (n_branches=5, d=1,2,4,8,16) / BlockB (4, d=1,2,4,8).

    The per-branch tap weights are packed into pw[j] = (n, nout) keyed by the
    input row-shift s_j, with the PyTorch concat [d1, add1, add2, ...] and the
    prefix sums add_g = d2 + ... + d_{2^g} folded into the output columns
    (branch with dilation 2^b contributes to cols [n1+(b-1)*n, nout)).
    """
    n = nout // n_branches
    n1 = nout - (n_branches - 1) * n
    dilations = [1] + [2 ** i for i in range(1, n_branches)]
    widths = [n1] + [n] * (n_branches - 1)
    branch_w = [0.05 * jax.random.normal(kg(), (3, n, w), jnp.float32)
                for w in widths]                               # channel-last taps

    def scatter(pw_j, w, b):
        if b == 0:
            return pw_j.at[:, 0:n1].add(w)                     # d1 -> cols [0, n1)
        reps = n_branches - b                                  # prefix-sum fold
        start = n1 + (b - 1) * n
        return pw_j.at[:, start:start + reps * n].add(jnp.tile(w, (1, reps)))

    pw0 = jnp.zeros((n, nout), jnp.float32)                    # merged center taps
    for b in range(n_branches):
        pw0 = scatter(pw0, branch_w[b][1], b)
    pw_list, shifts = [pw0], [0]
    for b in range(n_branches):
        d = dilations[b]
        for k, s in ((0, -d), (2, d)):
            pw_list.append(scatter(jnp.zeros((n, nout), jnp.float32),
                                   branch_w[b][k], b))
            shifts.append(s)
    pw = jnp.stack(pw_list, axis=0)                            # (S, n, nout)

    c1w = 0.05 * jax.random.normal(kg(), (nin, n), jnp.float32)
    c1b = 0.05 * jax.random.normal(kg(), (1, n), jnp.float32)
    s1, t1, a1 = _init_bn_prelu(kg, n)
    s2, t2, a2 = _init_bn_prelu(kg, nout)
    return {'c1w': c1w.astype(jnp.bfloat16), 'c1b': c1b,
            's1': s1, 't1': t1, 'a1': a1,
            'pw': pw.astype(jnp.bfloat16), 'shifts': tuple(shifts),
            's2': s2, 't2': t2, 'a2': a2, 'add': nin == nout}


def _init_conv_bn_prelu(kg, cin, cout):
    w = 0.05 * jax.random.normal(kg(), (3, cin, cout), jnp.float32)
    b = 0.05 * jax.random.normal(kg(), (1, cout), jnp.float32)
    s, t, a = _init_bn_prelu(kg, cout)
    return {'w': w.astype(jnp.bfloat16), 'b': b, 's': s, 't': t, 'a': a}


def _init_encoder_layer(kg, d_model, d_inner, n_head):
    d_head = d_model // n_head

    def mat(*shape):
        return 0.05 * jax.random.normal(kg(), shape, jnp.float32)

    # per-head Q/K/V weights packed along output columns -> lane-dense (D, D)
    return {'n_head': n_head, 'd_head': d_head,
            'wq': mat(d_model, n_head * d_head).astype(jnp.bfloat16),
            'wk': mat(d_model, n_head * d_head).astype(jnp.bfloat16),
            'wv': mat(d_model, n_head * d_head).astype(jnp.bfloat16),
            'wo': mat(n_head * d_head, d_model).astype(jnp.bfloat16),
            'ln1_g': jnp.ones((1, d_model), jnp.float32),
            'ln1_b': jnp.zeros((1, d_model), jnp.float32),
            'w1': mat(d_model, d_inner).astype(jnp.bfloat16),
            'b1': mat(1, d_inner),
            'w2': mat(d_inner, d_model).astype(jnp.bfloat16),
            'b2': mat(1, d_model),
            'ln2_g': jnp.ones((1, d_model), jnp.float32),
            'ln2_b': jnp.zeros((1, d_model), jnp.float32)}


def init_capla(key, seq_input_size, smi_input_size, out_dim):
    kg = _Keys(key)
    embed = 128
    params = {'smi_embed': _init_linear(kg, smi_input_size, embed),
              'seq_embed': _init_linear(kg, seq_input_size, embed)}
    conv_seq, ic = [], embed
    for oc in [32, 64, 64, out_dim]:
        conv_seq.append(_init_block(kg, ic, oc, 5))      # DilatedConvBlockA
        ic = oc
    params['conv_seq'] = conv_seq
    conv_pkt, ic = [], embed
    for oc in [32, 64, out_dim]:
        conv_pkt.append(_init_conv_bn_prelu(kg, ic, oc))
        ic = oc
    params['conv_pkt'] = conv_pkt
    params['smi_attention_poc'] = _init_encoder_layer(kg, 128, 128, 2)
    conv_smi, ic = [], embed
    for oc in [32, 64, out_dim]:
        conv_smi.append(_init_block(kg, ic, oc, 4))      # DilatedConvBlockB
        ic = oc
    params['conv_smi'] = conv_smi
    return params


# ----------------------------- CAPLA forward -----------------------------

def capla_forward(params, seq, pkt, coords, env):
    del env  # only used when 'EnvCenter' is in mode; mode='simple' here

    # sequence branch (last block fuses AdaptiveMaxPool1d(1) + Squeeze)
    x = linear(seq, params['seq_embed'])                   # (B, Lseq, 128)
    for blk in params['conv_seq'][:-1]:
        x = fused_block(blk, x)
    seq_conv = fused_block(params['conv_seq'][-1], x, pool=True)[:, 0, :]

    # pocket / ligand embeddings (shared seq_embed weights for pkt)
    pkt_embed = linear(pkt, params['seq_embed'])           # (B, Lpkt, 128)
    smi_embed = linear(coords, params['smi_embed'])        # (B, Lsmi, 128)

    # cross attention (ligand <-> pocket), shared weights, one launch
    smi_embed, pkt_embed = dual_encoder(params['smi_attention_poc'],
                                        smi_embed, pkt_embed)

    # pocket branch (last conv fuses the pool)
    x = pkt_embed
    for layer in params['conv_pkt'][:-1]:
        x = conv_bn_prelu(layer, x)
    pkt_conv = conv_bn_prelu(params['conv_pkt'][-1], x, pool=True)[:, 0, :]

    # ligand branch (last block fuses the pool)
    x = smi_embed
    for blk in params['conv_smi'][:-1]:
        x = fused_block(blk, x)
    smi_conv = fused_block(params['conv_smi'][-1], x, pool=True)[:, 0, :]

    # concat of three (B, out_dim) pooled rows; nn.Dropout(0.2) = identity at inference
    return jnp.concatenate([seq_conv, pkt_conv, smi_conv], axis=-1)


# ----------------------------- main -----------------------------

if __name__ == "__main__":
    root = jax.random.PRNGKey(0)
    kp, kseq, kpkt, ksmi, kenv = jax.random.split(root, 5)

    B = 2
    L_SEQ, L_PKT, L_SMI = 16, 16, 8
    SEQ_IN, SMI_IN, OUT_DIM = 16, 16, 32

    params = init_capla(kp, SEQ_IN, SMI_IN, OUT_DIM)

    seq = jax.random.normal(kseq, (B, L_SEQ, SEQ_IN), jnp.float32)
    pkt = jax.random.normal(kpkt, (B, L_PKT, SEQ_IN), jnp.float32)
    coords = jax.random.normal(ksmi, (B, L_SMI, SMI_IN), jnp.float32)
    env = jax.random.normal(kenv, (B, 4, 128), jnp.float32)  # unused ('simple' mode)

    out = capla_forward(params, seq, pkt, coords, env)
    out = jax.block_until_ready(out)
    assert out.shape == (B, 3 * OUT_DIM), out.shape
    assert bool(jnp.all(jnp.isfinite(out)))
    print("KERNEL_OK")
</pallas_src>

<mosaic_0001>
module attributes {stable_mosaic.version = 11 : i64} {
  func.func @_linear_kernel(%arg0: i32, %arg1: memref<32x16xf32, #tpu.memory_space<vmem>>, %arg2: memref<16x128xbf16, #tpu.memory_space<vmem>>, %arg3: memref<1x128xf32, #tpu.memory_space<vmem>>, %arg4: memref<32x128xf32, #tpu.memory_space<vmem>>) attributes {dimension_semantics = [#tpu.dimension_semantics<parallel>], iteration_bounds = array<i64: 1>, scalar_prefetch = 0 : i64, scratch_operands = 0 : i64, tpu.core_type = #tpu.core_type<tc>, window_params = [{transform_indices = @transform_0, window_bounds = array<i64: 32, 16>}, {pipeline_mode = #tpu.pipeline_mode<synchronous>, transform_indices = @transform_1, window_bounds = array<i64: 16, 128>}, {pipeline_mode = #tpu.pipeline_mode<synchronous>, transform_indices = @transform_2, window_bounds = array<i64: 1, 128>}, {transform_indices = @transform_3, window_bounds = array<i64: 32, 128>}]} {
    %c0 = arith.constant 0 : index
    %c0_0 = arith.constant 0 : index
    %0 = vector.load %arg1[%c0, %c0_0] : memref<32x16xf32, #tpu.memory_space<vmem>>, vector<32x16xf32>
    %1 = arith.truncf %0 : vector<32x16xf32> to vector<32x16xbf16>
    %c0_1 = arith.constant 0 : index
    %c0_2 = arith.constant 0 : index
    %2 = vector.load %arg2[%c0_1, %c0_2] : memref<16x128xbf16, #tpu.memory_space<vmem>>, vector<16x128xbf16>
    %cst = arith.constant dense<0.000000e+00> : vector<32x128xf32>
    %3 = tpu.matmul %1, %2, %cst {dimension_numbers = #tpu.dot_dimension_numbers<[1], [0], [0], [1], [0, 0, 1, 1], [], []>} : vector<32x16xbf16>, vector<16x128xbf16>, vector<32x128xf32> -> vector<32x128xf32>
    %c0_3 = arith.constant 0 : index
    %c0_4 = arith.constant 0 : index
    %4 = vector.load %arg3[%c0_3, %c0_4] : memref<1x128xf32, #tpu.memory_space<vmem>>, vector<1x128xf32>
    %5 = vector.broadcast %4 : vector<1x128xf32> to vector<32x128xf32>
    %6 = arith.addf %3, %5 : vector<32x128xf32>
    %c0_5 = arith.constant 0 : index
    %c0_6 = arith.constant 0 : index
    %7 = vector.load %arg4[%c0_5, %c0_6] : memref<32x128xf32, #tpu.memory_space<vmem>>, vector<32x128xf32>
    tpu.vector_store %arg4[%c0_5, %c0_6], %6 {strides = array<i32>} : memref<32x128xf32, #tpu.memory_space<vmem>>, vector<32x128xf32>,
    return
  }
  func.func @transform_0(%arg0: i32) -> (i32, i32) {
    %c0_i32 = arith.constant 0 : i32
    %c0_i32_0 = arith.constant 0 : i32
    return %arg0, %c0_i32 : i32, i32
  }
  func.func @transform_1(%arg0: i32) -> (i32, i32) {
    %c0_i32 = arith.constant 0 : i32
    %c0_i32_0 = arith.constant 0 : i32
    %c0_i32_1 = arith.constant 0 : i32
    return %c0_i32, %c0_i32_0 : i32, i32
  }
  func.func @transform_2(%arg0: i32) -> (i32, i32) {
    %c0_i32 = arith.constant 0 : i32
    %c0_i32_0 = arith.constant 0 : i32
    %c0_i32_1 = arith.constant 0 : i32
    return %c0_i32, %c0_i32_0 : i32, i32
  }
  func.func @transform_3(%arg0: i32) -> (i32, i32) {
    %c0_i32 = arith.constant 0 : i32
    %c0_i32_0 = arith.constant 0 : i32
    return %arg0, %c0_i32 : i32, i32
  }
}

</mosaic_0001>

<llo_original>
// kernel: tpu_custom_call.1
$region0: #{tpu_custom_call.1}
  #allocation0 [shape = 'u32[]', space=smem, size = 0x4, offset = 0x4, fixed_abs, tag = 'smem constant byte address 0x4 - core index']
  #allocation1 [shape = 'u32[144,128]{1,0:T(1,128)}', space=vmem, size = 0x12000, scoped, tag = 'internal scratch']
  %s0 = inlined_call_operand.vmem [shape: f32[32,16], index: 0, kind: input, shape index: {}]
  %s1 = inlined_call_operand.vmem [shape: bf16[16,128], index: 1, kind: input, shape index: {}]
  %s2 = inlined_call_operand.vmem [shape: f32[1,128], index: 2, kind: input, shape index: {}]
  %s3 = inlined_call_operand.hbm [shape: f32[32,128], index: 3, kind: output, shape index: {}]
  %s4 = sld [smem:[#allocation0]]
  $region22: #{tpu_custom_call.1} parent=0
    _
  %s6 = ssub.s32 1, %s4
  %s7 = scalar_select 0, %s6, %s4
  $region1: #{tpu_custom_call.1} parent=0
    #allocation2 [shape = 'u8[16384]{0}', space=vmem, size = 0x4000, scoped, tag = 'output window, operand 0, single buffered']
    #allocation3 [shape = 's32[1]{0}', space=sflag, size = 0x4, scoped, tag = 'scoped memory for tpu_custom_call.1']
    %8 = vsyncpa [#allocation3], 0
    // Predicated region
    $region2: #{tpu_custom_call.1} parent=1 // pred_check
      _
    $region3: #{tpu_custom_call.1} parent=1 // pred_check_branch
      %10 = sbr.rel (0) target = $region5
    $region4: #{tpu_custom_call.1} parent=1 // pred_region
      _
    $region5: #{tpu_custom_call.1} parent=1 // pred_fallthru
      _
    // Predicated region
    $region6: #{tpu_custom_call.1} parent=1 // pred_check
      _
    $region7: #{tpu_custom_call.1} parent=1 // pred_check_branch
      %12 = sbr.rel (0) target = $region9
    $region8: #{tpu_custom_call.1} parent=1 // pred_region
      _
    $region9: #{tpu_custom_call.1} parent=1 // pred_fallthru
      _
    // Predicated region
    $region10: #{tpu_custom_call.1} parent=1 // pred_check
      _
    $region11: #{tpu_custom_call.1} parent=1 // pred_check_branch
      %14 = sbr.rel (0) target = $region13
    $region12: #{tpu_custom_call.1} parent=1 // pred_region
      _
    $region13: #{tpu_custom_call.1} parent=1 // pred_fallthru
      _
    %v16 = vld [vmem:[%s0] sm:$0xff]
    %v17 = vld [vmem:[%s0 + $0x8] sm:$0xff]
    %v18 = vld [vmem:[%s0 + $0x10] sm:$0xff]
    %v19 = vld [vmem:[%s0 + $0x18] sm:$0xff]
    %v20 = vpack.c.bf16 %v17, %v16
    %v21 = vpack.c.bf16 %v19, %v18
    %v22 = vld [vmem:[%s1] sm:$0xf]
    %v23 = vld [vmem:[%s1 + $0x4] sm:$0xf]
    %v24 = vld [vmem:[%s2] sm:$0x1]
    %v26 = vlaneseq
    %v27 = vshrl.u32 %v26, 7
    %v28 = vsub.s32 0, %v27
    %v29 = vrot.slane %v24, %v28
    %v33 = vunpack.c.l.b16 %v22
    %v34 = vunpack.c.l.b16 %v23
    %v35 = vpack.c.b16 %v34, %v33
    %vm37 = vcmask 130048
    %v39 = vsel %vm37, %v20, 0
    %v42 = vsel %vm37, %v21, 0
    %44 = vmatprep.subr.bf16.mxu0 0
    %45 = vmatpush1.bf16.msra.mxu0 0
    %46 = vmatprep.subr.bf16.mxu0 0
    %47 = vmatpush1.bf16.msra.mxu0 0
    %48 = vmatprep.subr.bf16.mxu0 0
    %49 = vmatpush1.bf16.msra.mxu0 0
    %50 = vmatprep.subr.bf16.mxu0 0
    %51 = vmatpush1.bf16.msra.mxu0 0
    %52 = vmatprep.subr.bf16.mxu0 0
    %53 = vmatpush1.bf16.msra.mxu0 0
    %54 = vmatprep.subr.bf16.mxu0 0
    %55 = vmatpush1.bf16.msra.mxu0 0
    %56 = vmatprep.subr.bf16.mxu0 0
    %57 = vmatpush1.bf16.msra.mxu0 0
    %58 = vmatprep.subr.bf16.mxu0 0
    %59 = vmatpush1.bf16.msra.mxu0 %v35
    %60 = vmatprep.subr.bf16.mxu0 0
    %61 = vmatpush2.bf16.msra.mxu0 0
    %62 = vmatprep.subr.bf16.mxu0 0
    %63 = vmatpush2.bf16.msra.mxu0 0
    %64 = vmatprep.subr.bf16.mxu0 0
    %65 = vmatpush2.bf16.msra.mxu0 0
    %66 = vmatprep.subr.bf16.mxu0 0
    %67 = vmatpush2.bf16.msra.mxu0 0
    %68 = vmatprep.subr.bf16.mxu0 0
    %69 = vmatpush2.bf16.msra.mxu0 0
    %70 = vmatprep.subr.bf16.mxu0 0
    %71 = vmatpush2.bf16.msra.mxu0 0
    %72 = vmatprep.subr.bf16.mxu0 0
    %73 = vmatpush2.bf16.msra.mxu0 0
    %74 = vmatprep.subr.bf16.mxu0 0
    %75 = vmatpush2.bf16.msra.mxu0 0
    %76 = vmatprep.mubr.bf16.mxu0 0
    %77 = vmatmul.mubr.bf16.gmra.mxu0 %v39
    %v78 = vpop.f32.mrf.mxu0
    %v79 = vadd.f32 %v29, %v78
    %v80 = vpop.f32.mrf.mxu0
    %v81 = vpop.f32.mrf.mxu0
    %v82 = vadd.f32 %v29, %v81
    %v83 = vpop.f32.mrf.mxu0
    %84 = vmatprep.mubr.bf16.mxu0 0
    %85 = vmatmul.mubr.bf16.gmra.mxu0 %v42
    %v86 = vpop.f32.mrf.mxu0
    %v87 = vadd.f32 %v29, %v86
    %v88 = vpop.f32.mrf.mxu0
    %v89 = vpop.f32.mrf.mxu0
    %v90 = vadd.f32 %v29, %v89
    %v91 = vpop.f32.mrf.mxu0
    %92 = vdwg.mxu0
    %93 = vst [vmem:[#allocation2] sm:$0xff] %v79
    %94 = vst [vmem:[#allocation2 + $0x8] sm:$0xff] %v82
    %95 = vst [vmem:[#allocation2 + $0x10] sm:$0xff] %v87
    %96 = vst [vmem:[#allocation2 + $0x18] sm:$0xff] %v90
    // Predicated region
    $region14: #{tpu_custom_call.1} parent=1 // pred_check
      _
    $region15: #{tpu_custom_call.1} parent=1 // pred_check_branch
      %98 = sbr.rel (0) target = $region17
    $region16: #{tpu_custom_call.1} parent=1 // pred_region
      %s100 = ssub.s32 512, 512
      %101 = vsyncadd [#allocation3], %s100
      %s102 = sshll.u32 [#allocation2], 4
      %s103 = int_to_ptr.vmem [resolvable:$true] %s102
      %108 = dma.vmem_to_hbm [thread:$0]  %s103, 512, %s3, [#allocation3], 128, 128, 8
    $region17: #{tpu_custom_call.1} parent=1 // pred_fallthru
      _
    // Predicated region
    $region18: #{tpu_custom_call.1} parent=1 // pred_check
      _
    $region19: #{tpu_custom_call.1} parent=1 // pred_check_branch
      %110 = sbr.rel (0) target = $region21
    $region20: #{tpu_custom_call.1} parent=1 // pred_region
      %111 = dma.done [#allocation3], 512
    $region21: #{tpu_custom_call.1} parent=1 // pred_fallthru
      _
    %112 = vsyncpa [#allocation3], 1

</llo_original>
